<compile_context>
chip_gen: v6e
topology: v6e:2x2x1
jax: 0.10.0
libtpu: 0.0.40
codegen_flags: <defaults>
</compile_context>

<pallas_src>
import jax
import jax.numpy as jnp
import numpy as np
from jax.experimental import pallas as pl
from jax.experimental.pallas import tpu as pltpu


def _round_up(x, m):
    return ((x + m - 1) // m) * m


def _fit_tile(requested, total, base=256):
    """Largest multiple of `base` that is <= requested and divides `total`."""
    t = max(base, min(requested - requested % base, total))
    while total % t:
        t -= base
    return t


def _gin_node_kernel(a_ref, x_ref, w1_ref, vec1_ref, w2_ref, xn_ref, acc_ref):
    """acc += A_tile @ X_tile; at last k-tile: xn = relu(Lin2(relu(BN1·Lin1(acc))))."""
    k = pl.program_id(1)

    @pl.when(k == 0)
    def _():
        acc_ref[...] = jnp.zeros_like(acc_ref)

    # int8 A (exact small-integer edge counts) is upcast to bf16 in VMEM only,
    # X arrives bf16 -> native bf16 MXU dot with f32 accumulation.
    acc_ref[...] += jnp.dot(
        a_ref[...].astype(jnp.bfloat16), x_ref[...],
        preferred_element_type=jnp.float32)

    @pl.when(k == pl.num_programs(1) - 1)
    def _():
        vec1 = vec1_ref[...]
        b1 = vec1[0:1, :]            # Linear-1 bias with BN1 (running stats) folded in
        b2 = vec1[1:2, :]            # Linear-2 bias
        h = acc_ref[...]             # (tm, in_dim); self term already inside A (A + I)
        h = jnp.dot(h, w1_ref[...], preferred_element_type=jnp.float32) + b1
        h = jnp.maximum(h, 0.0)
        h = jnp.dot(h, w2_ref[...], preferred_element_type=jnp.float32) + b2
        xn_ref[...] = jnp.maximum(h, 0.0)   # outer F.relu(self.gin(...))


def _pool_head_kernel(xn_ref, bid_ref, vec2_ref, wh_ref, out_ref,
                      m_ref, l_ref, acc_ref):
    """Online per-graph softmax pooling over node tiles + (BN-folded) head."""
    t = pl.program_id(0)
    tm = xn_ref.shape[0]
    n_graphs = m_ref.shape[1]
    n_classes = out_ref.shape[1]
    neg = jnp.float32(-1e30)

    @pl.when(t == 0)
    def _():
        m_ref[...] = jnp.full_like(m_ref, neg)
        l_ref[...] = jnp.zeros_like(l_ref)
        acc_ref[...] = jnp.zeros_like(acc_ref)

    xn = xn_ref[...]                                   # (tm, Hp) f32
    vec2 = vec2_ref[...]                               # rows: [wg, bh', bg]
    wg = vec2[0:1, :]                                  # gate weight row (1, Hp)
    bg = vec2[2:3, 0:1]                                # gate bias (cancels in softmax)

    # gate via VPU broadcast-multiply + lane reduction (no (tm, 1) MXU matmul)
    gate = jnp.sum(xn * wg, axis=-1, keepdims=True) + bg          # (tm, 1)

    gids = jax.lax.broadcasted_iota(jnp.int32, (tm, n_graphs), 1)
    mask = bid_ref[...] == gids                        # (tm, G); padded nodes have id -1

    # online softmax update (flash-attention style) per graph
    s = jnp.where(mask, gate, neg)
    m_prev = m_ref[...]
    m_new = jnp.maximum(m_prev, jnp.max(s, axis=0, keepdims=True))        # (1, G)
    scale = jnp.exp(m_prev - m_new)                                       # (1, G)
    p = jnp.where(mask, jnp.exp(jnp.minimum(gate - m_new, 0.0)), 0.0)     # (tm, G)

    l_ref[...] = scale * l_ref[...] + jnp.sum(p, axis=0, keepdims=True)
    # accumulator kept transposed (Hp, G) so the (1, G) rescale broadcasts freely
    acc_ref[...] = scale * acc_ref[...] + jax.lax.dot_general(
        xn, p, (((0,), (0,)), ((), ())), preferred_element_type=jnp.float32)
    m_ref[...] = m_new

    @pl.when(t == pl.num_programs(0) - 1)
    def _():
        # guard empty graphs (denom == 0 would give NaN)
        inv_l = pl.reciprocal(jnp.maximum(l_ref[...], jnp.float32(1e-30)),
                              approx=False)                               # (1, G)
        pooled_t = acc_ref[...] * inv_l                                   # (Hp, G)
        bh = vec2[1:2, :n_classes]                                        # BN2-folded head bias
        logits = jax.lax.dot_general(
            pooled_t, wh_ref[...], (((0,), (0,)), ((), ())),
            preferred_element_type=jnp.float32) + bh                      # (G, C)
        mx = jnp.max(logits, axis=-1, keepdims=True)
        z = logits - mx
        lse = jnp.log(jnp.sum(jnp.exp(z), axis=-1, keepdims=True))
        out_ref[...] = z - lse


def better_model_forward(x, edge_index, batch, params, num_graphs,
                         tile_m=512, tile_k=4096, tile_nodes=4096):
    """Fold BN into the Linears, densify the graph as padded int8, call kernels.

    Tile defaults are sized against the tightest VMEM budget (v5e 16 MiB scoped
    default / v7x 64 MiB physical): double-buffered int8 A at (512, 4096) is
    4 MiB; tiles are clamped down so they always divide the padded node count.
    """
    n, in_dim = x.shape
    hidden = params["w1"].shape[1]
    n_classes = params["wh"].shape[1]
    hidden_p = _round_up(hidden, 128)          # lane-dense MLP epilogue / xn store
    assert n_classes <= hidden_p

    # ---- fold BatchNorm (inference: running stats) into the adjacent Linears ----
    def bn_fold(gamma, beta, mean, var, eps=1e-5):
        s = gamma / jnp.sqrt(var + eps)
        return s, beta - mean * s

    s1, t1 = bn_fold(params["bn1_g"], params["bn1_b"], params["bn1_m"], params["bn1_v"])
    w1 = params["w1"] * s1[None, :]                        # Lin1 + BN1 fused
    b1 = params["b1"] * s1 + t1
    s2, t2 = bn_fold(params["bn2_g"], params["bn2_b"], params["bn2_m"], params["bn2_v"])
    wh = s2[:, None] * params["wh"]                        # BN2 fused into head Linear
    bh = t2 @ params["wh"] + params["bh"]

    # ---- pad hidden to 128 (exact: padded columns stay 0 through the whole net) ----
    w1_p = jnp.zeros((in_dim, hidden_p), jnp.float32).at[:, :hidden].set(w1)
    w2_p = jnp.zeros((hidden_p, hidden_p), jnp.float32).at[:hidden, :hidden].set(params["w2"])
    vec1 = (jnp.zeros((2, hidden_p), jnp.float32)
            .at[0, :hidden].set(b1)
            .at[1, :hidden].set(params["b2"]))                               # [b1', b2]
    wg_p = jnp.zeros((hidden_p,), jnp.float32).at[:hidden].set(params["wg"][:, 0])
    bh_row = jnp.zeros((hidden_p,), jnp.float32).at[:n_classes].set(bh)
    vec2 = jnp.stack(
        [wg_p, bh_row, jnp.full((hidden_p,), params["bg"][0], jnp.float32)],
        axis=0)                                                              # [wg, bh', bg]
    wh_p = jnp.zeros((hidden_p, n_classes), jnp.float32).at[:hidden, :].set(wh)

    # ---- pad node count, pick tiles that divide it ----
    np_pad = _round_up(n, 256)
    tm = _fit_tile(tile_m, np_pad)         # row tile of A / xn
    tk = _fit_tile(tile_k, np_pad)         # k-tile of A (large, asymmetric)
    tn2 = _fit_tile(tile_nodes, np_pad)    # node tile of the pooling kernel

    # ---- dense (A + I) built ONCE at padded shape, stored int8 (half of bf16 HBM) ----
    # int8 is exact for parallel-edge multiplicities <= 127.
    # TODO(synk): direct int8 scatter-add (drop the int32 temp) and, for large
    # sparse graphs, a CSR / edge-list gather kernel (scalar-prefetched row
    # offsets + DMA-gathered x rows) to turn O(N^2) HBM traffic into O(E).
    src = edge_index[0].astype(jnp.int32)
    dst = edge_index[1].astype(jnp.int32)
    loops = jnp.arange(n, dtype=jnp.int32)
    a = jnp.zeros((np_pad, np_pad), jnp.int32)
    a = a.at[jnp.concatenate([dst, loops]),
             jnp.concatenate([src, loops])].add(1).astype(jnp.int8)

    xp = jnp.pad(x, ((0, np_pad - n), (0, 0))).astype(jnp.bfloat16)
    bid = jnp.pad(batch.astype(jnp.int32), (0, np_pad - n), constant_values=-1)[:, None]

    # ---- kernel 1: tiled (A + I) @ X + GIN MLP -> xn (node features) ----
    xn = pl.pallas_call(
        _gin_node_kernel,
        out_shape=jax.ShapeDtypeStruct((np_pad, hidden_p), jnp.float32),
        grid_spec=pltpu.PrefetchScalarGridSpec(
            num_scalar_prefetch=0,
            grid=(np_pad // tm, np_pad // tk),
            in_specs=[
                pl.BlockSpec((tm, tk), lambda i, k: (i, k)),              # A (int8)
                pl.BlockSpec((tk, in_dim), lambda i, k: (k, 0)),          # X (bf16)
                pl.BlockSpec((in_dim, hidden_p), lambda i, k: (0, 0)),    # W1 (BN1 folded)
                pl.BlockSpec((2, hidden_p), lambda i, k: (0, 0)),         # [b1', b2]
                pl.BlockSpec((hidden_p, hidden_p), lambda i, k: (0, 0)),  # W2
            ],
            out_specs=pl.BlockSpec((tm, hidden_p), lambda i, k: (i, 0)),
            scratch_shapes=[pltpu.VMEM((tm, in_dim), jnp.float32)],
        ),
        compiler_params=pltpu.CompilerParams(
            dimension_semantics=("parallel", "arbitrary")),
    )(a, xp, w1_p, vec1, w2_p)

    # ---- kernel 2: attention pooling (online softmax over big node tiles) + head ----
    out = pl.pallas_call(
        _pool_head_kernel,
        out_shape=jax.ShapeDtypeStruct((num_graphs, n_classes), jnp.float32),
        grid_spec=pltpu.PrefetchScalarGridSpec(
            num_scalar_prefetch=0,
            grid=(np_pad // tn2,),
            in_specs=[
                pl.BlockSpec((tn2, hidden_p), lambda t: (t, 0)),          # xn
                pl.BlockSpec((tn2, 1), lambda t: (t, 0)),                 # graph ids
                pl.BlockSpec((3, hidden_p), lambda t: (0, 0)),            # [wg, bh', bg]
                pl.BlockSpec((hidden_p, n_classes), lambda t: (0, 0)),    # Wh (BN2 folded)
            ],
            out_specs=pl.BlockSpec((num_graphs, n_classes), lambda t: (0, 0)),
            scratch_shapes=[
                pltpu.VMEM((1, num_graphs), jnp.float32),                 # running max
                pltpu.VMEM((1, num_graphs), jnp.float32),                 # running denom
                pltpu.VMEM((hidden_p, num_graphs), jnp.float32),          # pooled^T acc
            ],
        ),
        compiler_params=pltpu.CompilerParams(
            dimension_semantics=("arbitrary",)),
    )(xn, bid, vec2, wh_p)
    return out


def reference_forward(x, edge_index, batch, params, num_graphs):
    """Pure-JAX reference (same math as the PyTorch module, eval mode, f32)."""
    n = x.shape[0]
    src, dst = edge_index[0], edge_index[1]
    a = jnp.zeros((n, n), jnp.float32).at[dst, src].add(1.0)
    mt = jax.nn.one_hot(batch, num_graphs, dtype=jnp.float32)

    def bn(h, g, b, m, v, eps=1e-5):
        return (h - m) / jnp.sqrt(v + eps) * g + b

    h = x + a @ x
    h = h @ params["w1"] + params["b1"]
    h = jax.nn.relu(bn(h, params["bn1_g"], params["bn1_b"], params["bn1_m"], params["bn1_v"]))
    h = h @ params["w2"] + params["b2"]
    xn = jax.nn.relu(h)
    gate = xn @ params["wg"] + params["bg"]
    s = jnp.where(mt > 0, gate, -1e30)
    m = jnp.max(s, axis=0, keepdims=True)
    e = jnp.where(mt > 0, jnp.exp(gate - m), 0.0)
    alpha = e / jnp.sum(e, axis=0, keepdims=True)
    pooled = alpha.T @ xn
    pooled = bn(pooled, params["bn2_g"], params["bn2_b"], params["bn2_m"], params["bn2_v"])
    logits = pooled @ params["wh"] + params["bh"]
    return jax.nn.log_softmax(logits, axis=-1)


if __name__ == "__main__":
    in_dim, hidden, n_classes = 4, 32, 4
    num_nodes, num_edges, num_graphs = 16, 40, 2

    key = jax.random.PRNGKey(0)
    ks = jax.random.split(key, 12)

    # Deterministic synthetic parameters (module __init__ shapes).
    params = {
        "w1": jax.random.normal(ks[0], (in_dim, hidden), jnp.float32) * 0.3,
        "b1": jax.random.normal(ks[1], (hidden,), jnp.float32) * 0.1,
        "bn1_g": jnp.ones((hidden,), jnp.float32) * 1.1,
        "bn1_b": jnp.ones((hidden,), jnp.float32) * 0.05,
        "bn1_m": jnp.ones((hidden,), jnp.float32) * 0.02,
        "bn1_v": jnp.ones((hidden,), jnp.float32) * 0.9,
        "w2": jax.random.normal(ks[2], (hidden, hidden), jnp.float32) * 0.2,
        "b2": jax.random.normal(ks[3], (hidden,), jnp.float32) * 0.1,
        "wg": jax.random.normal(ks[4], (hidden, 1), jnp.float32) * 0.3,
        "bg": jax.random.normal(ks[5], (1,), jnp.float32) * 0.1,
        "bn2_g": jnp.ones((hidden,), jnp.float32) * 0.95,
        "bn2_b": jnp.ones((hidden,), jnp.float32) * -0.03,
        "bn2_m": jnp.ones((hidden,), jnp.float32) * 0.01,
        "bn2_v": jnp.ones((hidden,), jnp.float32) * 1.05,
        "wh": jax.random.normal(ks[6], (hidden, n_classes), jnp.float32) * 0.25,
        "bh": jax.random.normal(ks[7], (n_classes,), jnp.float32) * 0.1,
    }

    # Example graph batch: node features, random edges, 2 graphs of 8 nodes.
    x = jax.random.normal(ks[8], (num_nodes, in_dim), jnp.float32)
    src = jax.random.randint(ks[9], (num_edges,), 0, num_nodes)
    dst = jax.random.randint(ks[10], (num_edges,), 0, num_nodes)
    edge_index = jnp.stack([src, dst], axis=0)          # (2, E)
    batch = jnp.concatenate([jnp.zeros((8,), jnp.int32), jnp.ones((8,), jnp.int32)])

    out = better_model_forward(x, edge_index, batch, params, num_graphs)
    out = jax.block_until_ready(out)

    # (a) Kernel math vs the reference fed the SAME bf16-representable inputs:
    #     isolates the deliberate bf16 feature quantization; differences are just
    #     accumulation order / matmul-pass choices.
    x_q = x.astype(jnp.bfloat16).astype(jnp.float32)
    ref_q = reference_forward(x_q, edge_index, batch, params, num_graphs)
    np.testing.assert_allclose(np.asarray(out), np.asarray(ref_q), atol=2e-2, rtol=2e-2)

    # (b) Fidelity vs the pure-f32 module semantics; tolerance relaxed (per the
    #     perf review) because node features are streamed to the MXU in bf16.
    ref = reference_forward(x, edge_index, batch, params, num_graphs)
    np.testing.assert_allclose(np.asarray(out), np.asarray(ref), atol=5e-2, rtol=5e-2)

    print("KERNEL_OK")
</pallas_src>

<mosaic_0001>
module attributes {stable_mosaic.version = 11 : i64} {
  func.func @_gin_node_kernel(%arg0: i32, %arg1: i32, %arg2: memref<256x256xi8, #tpu.memory_space<vmem>>, %arg3: memref<256x4xbf16, #tpu.memory_space<vmem>>, %arg4: memref<4x128xf32, #tpu.memory_space<vmem>>, %arg5: memref<2x128xf32, #tpu.memory_space<vmem>>, %arg6: memref<128x128xf32, #tpu.memory_space<vmem>>, %arg7: memref<256x128xf32, #tpu.memory_space<vmem>>, %arg8: memref<256x4xf32, #tpu.memory_space<vmem>>) attributes {dimension_semantics = [#tpu.dimension_semantics<parallel>, #tpu.dimension_semantics<arbitrary>], iteration_bounds = array<i64: 1, 1>, scalar_prefetch = 0 : i64, scratch_operands = 1 : i64, tpu.core_type = #tpu.core_type<tc>, window_params = [{transform_indices = @transform_0, window_bounds = array<i64: 256, 256>}, {transform_indices = @transform_1, window_bounds = array<i64: 256, 4>}, {pipeline_mode = #tpu.pipeline_mode<synchronous>, transform_indices = @transform_2, window_bounds = array<i64: 4, 128>}, {pipeline_mode = #tpu.pipeline_mode<synchronous>, transform_indices = @transform_3, window_bounds = array<i64: 2, 128>}, {pipeline_mode = #tpu.pipeline_mode<synchronous>, transform_indices = @transform_4, window_bounds = array<i64: 128, 128>}, {transform_indices = @transform_5, window_bounds = array<i64: 256, 128>}]} {
    %c0_i32 = arith.constant 0 : i32
    %0 = arith.cmpi eq, %arg1, %c0_i32 : i32
    %1 = arith.extui %0 : i1 to i32
    %c0_i32_0 = arith.constant 0 : i32
    %2 = arith.cmpi ne, %1, %c0_i32_0 : i32
    scf.if %2 {
      %cst_10 = arith.constant 0.000000e+00 : f32
      %13 = vector.broadcast %cst_10 : f32 to vector<256x4xf32>
      %c0_11 = arith.constant 0 : index
      %c0_12 = arith.constant 0 : index
      %14 = vector.load %arg8[%c0_11, %c0_12] : memref<256x4xf32, #tpu.memory_space<vmem>>, vector<256x4xf32>
      tpu.vector_store %arg8[%c0_11, %c0_12], %13 {strides = array<i32>} : memref<256x4xf32, #tpu.memory_space<vmem>>, vector<256x4xf32>,
    } else {
    }
    %c0 = arith.constant 0 : index
    %c0_1 = arith.constant 0 : index
    %3 = vector.load %arg8[%c0, %c0_1] : memref<256x4xf32, #tpu.memory_space<vmem>>, vector<256x4xf32>
    %c0_2 = arith.constant 0 : index
    %c0_3 = arith.constant 0 : index
    %4 = vector.load %arg2[%c0_2, %c0_3] : memref<256x256xi8, #tpu.memory_space<vmem>>, vector<256x256xi8>
    %5 = arith.sitofp %4 : vector<256x256xi8> to vector<256x256xbf16>
    %c0_4 = arith.constant 0 : index
    %c0_5 = arith.constant 0 : index
    %6 = vector.load %arg3[%c0_4, %c0_5] : memref<256x4xbf16, #tpu.memory_space<vmem>>, vector<256x4xbf16>
    %cst = arith.constant dense<0.000000e+00> : vector<256x4xf32>
    %7 = tpu.matmul %5, %6, %cst {dimension_numbers = #tpu.dot_dimension_numbers<[1], [0], [0], [1], [0, 0, 1, 1], [], []>} : vector<256x256xbf16>, vector<256x4xbf16>, vector<256x4xf32> -> vector<256x4xf32>
    %8 = arith.addf %3, %7 : vector<256x4xf32>
    %c0_6 = arith.constant 0 : index
    %c0_7 = arith.constant 0 : index
    %9 = vector.load %arg8[%c0_6, %c0_7] : memref<256x4xf32, #tpu.memory_space<vmem>>, vector<256x4xf32>
    tpu.vector_store %arg8[%c0_6, %c0_7], %8 {strides = array<i32>} : memref<256x4xf32, #tpu.memory_space<vmem>>, vector<256x4xf32>,
    %c0_i32_8 = arith.constant 0 : i32
    %10 = arith.cmpi eq, %arg1, %c0_i32_8 : i32
    %11 = arith.extui %10 : i1 to i32
    %c0_i32_9 = arith.constant 0 : i32
    %12 = arith.cmpi ne, %11, %c0_i32_9 : i32
    scf.if %12 {
      %c0_10 = arith.constant 0 : index
      %c0_11 = arith.constant 0 : index
      %13 = vector.load %arg5[%c0_10, %c0_11] : memref<2x128xf32, #tpu.memory_space<vmem>>, vector<2x128xf32>
      %14 = vector.extract_strided_slice %13 {offsets = [0, 0], sizes = [1, 128], strides = [1, 1]} : vector<2x128xf32> to vector<1x128xf32>
      %15 = vector.extract_strided_slice %13 {offsets = [1, 0], sizes = [1, 128], strides = [1, 1]} : vector<2x128xf32> to vector<1x128xf32>
      %c0_12 = arith.constant 0 : index
      %c0_13 = arith.constant 0 : index
      %16 = vector.load %arg8[%c0_12, %c0_13] : memref<256x4xf32, #tpu.memory_space<vmem>>, vector<256x4xf32>
      %c0_14 = arith.constant 0 : index
      %c0_15 = arith.constant 0 : index
      %17 = vector.load %arg4[%c0_14, %c0_15] : memref<4x128xf32, #tpu.memory_space<vmem>>, vector<4x128xf32>
      %cst_16 = arith.constant dense<0.000000e+00> : vector<256x128xf32>
      %18 = tpu.matmul %16, %17, %cst_16 {dimension_numbers = #tpu.dot_dimension_numbers<[1], [0], [0], [1], [0, 0, 1, 1], [], []>} : vector<256x4xf32>, vector<4x128xf32>, vector<256x128xf32> -> vector<256x128xf32>
      %19 = vector.broadcast %14 : vector<1x128xf32> to vector<256x128xf32>
      %20 = arith.addf %18, %19 : vector<256x128xf32>
      %cst_17 = arith.constant 0.000000e+00 : f32
      %21 = vector.broadcast %cst_17 : f32 to vector<256x128xf32>
      %22 = arith.maximumf %20, %21 : vector<256x128xf32>
      %c0_18 = arith.constant 0 : index
      %c0_19 = arith.constant 0 : index
      %23 = vector.load %arg6[%c0_18, %c0_19] : memref<128x128xf32, #tpu.memory_space<vmem>>, vector<128x128xf32>
      %cst_20 = arith.constant dense<0.000000e+00> : vector<256x128xf32>
      %24 = tpu.matmul %22, %23, %cst_20 {dimension_numbers = #tpu.dot_dimension_numbers<[1], [0], [0], [1], [0, 0, 1, 1], [], []>} : vector<256x128xf32>, vector<128x128xf32>, vector<256x128xf32> -> vector<256x128xf32>
      %25 = vector.broadcast %15 : vector<1x128xf32> to vector<256x128xf32>
      %26 = arith.addf %24, %25 : vector<256x128xf32>
      %cst_21 = arith.constant 0.000000e+00 : f32
      %27 = vector.broadcast %cst_21 : f32 to vector<256x128xf32>
      %28 = arith.maximumf %26, %27 : vector<256x128xf32>
      %c0_22 = arith.constant 0 : index
      %c0_23 = arith.constant 0 : index
      %29 = vector.load %arg7[%c0_22, %c0_23] : memref<256x128xf32, #tpu.memory_space<vmem>>, vector<256x128xf32>
      tpu.vector_store %arg7[%c0_22, %c0_23], %28 {strides = array<i32>} : memref<256x128xf32, #tpu.memory_space<vmem>>, vector<256x128xf32>,
    } else {
    }
    return
  }
  func.func @transform_0(%arg0: i32, %arg1: i32) -> (i32, i32) {
    %c0_i32 = arith.constant 0 : i32
    return %arg0, %arg1 : i32, i32
  }
  func.func @transform_1(%arg0: i32, %arg1: i32) -> (i32, i32) {
    %c0_i32 = arith.constant 0 : i32
    %c0_i32_0 = arith.constant 0 : i32
    return %arg1, %c0_i32 : i32, i32
  }
  func.func @transform_2(%arg0: i32, %arg1: i32) -> (i32, i32) {
    %c0_i32 = arith.constant 0 : i32
    %c0_i32_0 = arith.constant 0 : i32
    %c0_i32_1 = arith.constant 0 : i32
    return %c0_i32, %c0_i32_0 : i32, i32
  }
  func.func @transform_3(%arg0: i32, %arg1: i32) -> (i32, i32) {
    %c0_i32 = arith.constant 0 : i32
    %c0_i32_0 = arith.constant 0 : i32
    %c0_i32_1 = arith.constant 0 : i32
    return %c0_i32, %c0_i32_0 : i32, i32
  }
  func.func @transform_4(%arg0: i32, %arg1: i32) -> (i32, i32) {
    %c0_i32 = arith.constant 0 : i32
    %c0_i32_0 = arith.constant 0 : i32
    %c0_i32_1 = arith.constant 0 : i32
    return %c0_i32, %c0_i32_0 : i32, i32
  }
  func.func @transform_5(%arg0: i32, %arg1: i32) -> (i32, i32) {
    %c0_i32 = arith.constant 0 : i32
    %c0_i32_0 = arith.constant 0 : i32
    return %arg0, %c0_i32 : i32, i32
  }
}

</mosaic_0001>

<llo_original>
// kernel: tpu_custom_call.1
$region0: #{tpu_custom_call.1}
  #allocation0 [shape = 'u32[]', space=smem, size = 0x4, offset = 0x4, fixed_abs, tag = 'smem constant byte address 0x4 - core index']
  #allocation1 [shape = 'u32[144,128]{1,0:T(1,128)}', space=vmem, size = 0x12000, scoped, tag = 'internal scratch']
  #allocation2 [shape = 'f32[256,4]{1,0:T(8,128)}', space=vmem, size = 0x20000, scoped, tag = 'scratch operand']
  %s0 = inlined_call_operand.vmem [shape: s8[256,256], index: 0, kind: input, shape index: {}]
  %s1 = inlined_call_operand.vmem [shape: bf16[256,4], index: 1, kind: input, shape index: {}]
  %s2 = inlined_call_operand.vmem [shape: f32[4,128], index: 2, kind: input, shape index: {}]
  %s3 = inlined_call_operand.vmem [shape: f32[2,128], index: 3, kind: input, shape index: {}]
  %s4 = inlined_call_operand.hbm [shape: f32[128,128], index: 4, kind: input, shape index: {}]
  %s5 = inlined_call_operand.hbm [shape: f32[256,128], index: 5, kind: output, shape index: {}]
  %s6 = sld [smem:[#allocation0]]
  $region42: #{tpu_custom_call.1} parent=0
    _
  %s8 = ssub.s32 1, %s6
  %s9 = scalar_select 0, %s8, %s6
  $region1: #{tpu_custom_call.1} parent=0
    #allocation3 [shape = 'u8[65536]{0}', space=vmem, size = 0x10000, scoped, tag = 'input window, operand 4, single buffered']
    #allocation4 [shape = 's32[1]{0}', space=sflag, size = 0x4, scoped, tag = 'scoped memory for tpu_custom_call.1']
    #allocation5 [shape = 's32[1]{0}', space=sflag, size = 0x4, scoped, tag = 'scoped memory for tpu_custom_call.1']
    #allocation6 [shape = 'u8[131072]{0}', space=vmem, size = 0x20000, scoped, tag = 'output window, operand 0, single buffered']
    %10 = vsyncpa [#allocation4], 0
    %11 = vsyncpa [#allocation5], 0
    // Predicated region
    $region2: #{tpu_custom_call.1} parent=1 // pred_check
      _
    $region3: #{tpu_custom_call.1} parent=1 // pred_check_branch
      %13 = sbr.rel (0) target = $region5
    $region4: #{tpu_custom_call.1} parent=1 // pred_region
      _
    $region5: #{tpu_custom_call.1} parent=1 // pred_fallthru
      _
    // Predicated region
    $region6: #{tpu_custom_call.1} parent=1 // pred_check
      _
    $region7: #{tpu_custom_call.1} parent=1 // pred_check_branch
      %15 = sbr.rel (0) target = $region9
    $region8: #{tpu_custom_call.1} parent=1 // pred_region
      _
    $region9: #{tpu_custom_call.1} parent=1 // pred_fallthru
      _
    // Predicated region
    $region10: #{tpu_custom_call.1} parent=1 // pred_check
      _
    $region11: #{tpu_custom_call.1} parent=1 // pred_check_branch
      %17 = sbr.rel (0) target = $region13
    $region12: #{tpu_custom_call.1} parent=1 // pred_region
      _
    $region13: #{tpu_custom_call.1} parent=1 // pred_fallthru
      _
    // Predicated region
    $region14: #{tpu_custom_call.1} parent=1 // pred_check
      _
    $region15: #{tpu_custom_call.1} parent=1 // pred_check_branch
      %19 = sbr.rel (0) target = $region17
    $region16: #{tpu_custom_call.1} parent=1 // pred_region
      _
    $region17: #{tpu_custom_call.1} parent=1 // pred_fallthru
      _
    // Predicated region
    $region18: #{tpu_custom_call.1} parent=1 // pred_check
      _
    $region19: #{tpu_custom_call.1} parent=1 // pred_check_branch
      %21 = sbr.rel (0) target = $region21
    $region20: #{tpu_custom_call.1} parent=1 // pred_region
      %s23 = ssub.s32 2048, 2048
      %24 = vsyncadd [#allocation4], %s23
      %s25 = sshll.u32 [#allocation3], 4
      %s26 = int_to_ptr.vmem [resolvable:$true] %s25
      %31 = dma.hbm_to_vmem [thread:$0]  %s4, 2048, %s26, [#allocation4], 128, 128, 8
    $region21: #{tpu_custom_call.1} parent=1 // pred_fallthru
      _
    // Predicated region
    $region22: #{tpu_custom_call.1} parent=1 // pred_check
      _
    $region23: #{tpu_custom_call.1} parent=1 // pred_check_branch
      %33 = sbr.rel (0) target = $region25
    $region24: #{tpu_custom_call.1} parent=1 // pred_region
      %34 = dma.done [#allocation4], 2048
    $region25: #{tpu_custom_call.1} parent=1 // pred_fallthru
      _
    %p36 = scmp.eq.s32.totalorder 0, 0
    // Predicated region
    $region26: #{tpu_custom_call.1} parent=1 // pred_check
      %p37 = pneg %p36
    $region27: #{tpu_custom_call.1} parent=1 // pred_check_branch
      %39 = sbr.rel (%p37) target = $region29
    $region28: #{tpu_custom_call.1} parent=1 // pred_region
      %vm40 = vcmask 31744
      %41 = vst.msk [vmem:[#allocation2] sm:$0xff] %vm40, 0.0
      %42 = vst.msk [vmem:[#allocation2 + $0x8] sm:$0xff] %vm40, 0.0
      %43 = vst.msk [vmem:[#allocation2 + $0x10] sm:$0xff] %vm40, 0.0
      %44 = vst.msk [vmem:[#allocation2 + $0x18] sm:$0xff] %vm40, 0.0
      %45 = vst.msk [vmem:[#allocation2 + $0x20] sm:$0xff] %vm40, 0.0
      %46 = vst.msk [vmem:[#allocation2 + $0x28] sm:$0xff] %vm40, 0.0
      %47 = vst.msk [vmem:[#allocation2 + $0x30] sm:$0xff] %vm40, 0.0
      %48 = vst.msk [vmem:[#allocation2 + $0x38] sm:$0xff] %vm40, 0.0
      %49 = vst.msk [vmem:[#allocation2 + $0x40] sm:$0xff] %vm40, 0.0
      %50 = vst.msk [vmem:[#allocation2 + $0x48] sm:$0xff] %vm40, 0.0
      %51 = vst.msk [vmem:[#allocation2 + $0x50] sm:$0xff] %vm40, 0.0
      %52 = vst.msk [vmem:[#allocation2 + $0x58] sm:$0xff] %vm40, 0.0
      %53 = vst.msk [vmem:[#allocation2 + $0x60] sm:$0xff] %vm40, 0.0
      %54 = vst.msk [vmem:[#allocation2 + $0x68] sm:$0xff] %vm40, 0.0
      %55 = vst.msk [vmem:[#allocation2 + $0x70] sm:$0xff] %vm40, 0.0
      %56 = vst.msk [vmem:[#allocation2 + $0x78] sm:$0xff] %vm40, 0.0
      %57 = vst.msk [vmem:[#allocation2 + $0x80] sm:$0xff] %vm40, 0.0
      %58 = vst.msk [vmem:[#allocation2 + $0x88] sm:$0xff] %vm40, 0.0
      %59 = vst.msk [vmem:[#allocation2 + $0x90] sm:$0xff] %vm40, 0.0
      %60 = vst.msk [vmem:[#allocation2 + $0x98] sm:$0xff] %vm40, 0.0
      %61 = vst.msk [vmem:[#allocation2 + $0xa0] sm:$0xff] %vm40, 0.0
      %62 = vst.msk [vmem:[#allocation2 + $0xa8] sm:$0xff] %vm40, 0.0
      %63 = vst.msk [vmem:[#allocation2 + $0xb0] sm:$0xff] %vm40, 0.0
      %64 = vst.msk [vmem:[#allocation2 + $0xb8] sm:$0xff] %vm40, 0.0
      %65 = vst.msk [vmem:[#allocation2 + $0xc0] sm:$0xff] %vm40, 0.0
      %66 = vst.msk [vmem:[#allocation2 + $0xc8] sm:$0xff] %vm40, 0.0
      %67 = vst.msk [vmem:[#allocation2 + $0xd0] sm:$0xff] %vm40, 0.0
      %68 = vst.msk [vmem:[#allocation2 + $0xd8] sm:$0xff] %vm40, 0.0
      %69 = vst.msk [vmem:[#allocation2 + $0xe0] sm:$0xff] %vm40, 0.0
      %70 = vst.msk [vmem:[#allocation2 + $0xe8] sm:$0xff] %vm40, 0.0
      %71 = vst.msk [vmem:[#allocation2 + $0xf0] sm:$0xff] %vm40, 0.0
      %72 = vst.msk [vmem:[#allocation2 + $0xf8] sm:$0xff] %vm40, 0.0
    $region29: #{tpu_custom_call.1} parent=1 // pred_fallthru
      _
    %v73 = vld [vmem:[#allocation2] sm:$0xff]
    %v74 = vld [vmem:[#allocation2 + $0x8] sm:$0xff]
    %v75 = vld [vmem:[#allocation2 + $0x10] sm:$0xff]
    %v76 = vld [vmem:[#allocation2 + $0x18] sm:$0xff]
    %v77 = vld [vmem:[#allocation2 + $0x20] sm:$0xff]
    %v78 = vld [vmem:[#allocation2 + $0x28] sm:$0xff]
    %v79 = vld [vmem:[#allocation2 + $0x30] sm:$0xff]
    %v80 = vld [vmem:[#allocation2 + $0x38] sm:$0xff]
    %v81 = vld [vmem:[#allocation2 + $0x40] sm:$0xff]
    %v82 = vld [vmem:[#allocation2 + $0x48] sm:$0xff]
    %v83 = vld [vmem:[#allocation2 + $0x50] sm:$0xff]
    %v84 = vld [vmem:[#allocation2 + $0x58] sm:$0xff]
    %v85 = vld [vmem:[#allocation2 + $0x60] sm:$0xff]
    %v86 = vld [vmem:[#allocation2 + $0x68] sm:$0xff]
    %v87 = vld [vmem:[#allocation2 + $0x70] sm:$0xff]
    %v88 = vld [vmem:[#allocation2 + $0x78] sm:$0xff]
    %v89 = vld [vmem:[#allocation2 + $0x80] sm:$0xff]
    %v90 = vld [vmem:[#allocation2 + $0x88] sm:$0xff]
    %v91 = vld [vmem:[#allocation2 + $0x90] sm:$0xff]
    %v92 = vld [vmem:[#allocation2 + $0x98] sm:$0xff]
    %v93 = vld [vmem:[#allocation2 + $0xa0] sm:$0xff]
    %v94 = vld [vmem:[#allocation2 + $0xa8] sm:$0xff]
    %v95 = vld [vmem:[#allocation2 + $0xb0] sm:$0xff]
    %v96 = vld [vmem:[#allocation2 + $0xb8] sm:$0xff]
    %v97 = vld [vmem:[#allocation2 + $0xc0] sm:$0xff]
    %v98 = vld [vmem:[#allocation2 + $0xc8] sm:$0xff]
    %v99 = vld [vmem:[#allocation2 + $0xd0] sm:$0xff]
    %v100 = vld [vmem:[#allocation2 + $0xd8] sm:$0xff]
    %v101 = vld [vmem:[#allocation2 + $0xe0] sm:$0xff]
    %v102 = vld [vmem:[#allocation2 + $0xe8] sm:$0xff]
    %v103 = vld [vmem:[#allocation2 + $0xf0] sm:$0xff]
    %v104 = vld [vmem:[#allocation2 + $0xf8] sm:$0xff]
    %v105 = vld [vmem:[%s0] sm:$0xff]
    %v106 = vld [vmem:[%s0 + $0x8] sm:$0xff]
    %v107 = vld [vmem:[%s0 + $0x10] sm:$0xff]
    %v108 = vld [vmem:[%s0 + $0x18] sm:$0xff]
    %v109 = vld [vmem:[%s0 + $0x20] sm:$0xff]
    %v110 = vld [vmem:[%s0 + $0x28] sm:$0xff]
    %v111 = vld [vmem:[%s0 + $0x30] sm:$0xff]
    %v112 = vld [vmem:[%s0 + $0x38] sm:$0xff]
    %v113 = vld [vmem:[%s0 + $0x40] sm:$0xff]
    %v114 = vld [vmem:[%s0 + $0x48] sm:$0xff]
    %v115 = vld [vmem:[%s0 + $0x50] sm:$0xff]
    %v116 = vld [vmem:[%s0 + $0x58] sm:$0xff]
    %v117 = vld [vmem:[%s0 + $0x60] sm:$0xff]
    %v118 = vld [vmem:[%s0 + $0x68] sm:$0xff]
    %v119 = vld [vmem:[%s0 + $0x70] sm:$0xff]
    %v120 = vld [vmem:[%s0 + $0x78] sm:$0xff]
    %v121 = vunpack.c.l.s8.bf16 %v105
    %v122 = vunpack.c.l.s8.bf16 %v106
    %v123 = vunpack.c.h.s8.bf16 %v105
    %v124 = vunpack.c.h.s8.bf16 %v106
    %v125 = vunpack.c.l.s8.bf16 %v107
    %v126 = vunpack.c.l.s8.bf16 %v108
    %v127 = vunpack.c.h.s8.bf16 %v107
    %v128 = vunpack.c.h.s8.bf16 %v108
    %v129 = vunpack.c.l.s8.bf16 %v109
    %v130 = vunpack.c.l.s8.bf16 %v110
    %v131 = vunpack.c.h.s8.bf16 %v109
    %v132 = vunpack.c.h.s8.bf16 %v110
    %v133 = vunpack.c.l.s8.bf16 %v111
    %v134 = vunpack.c.l.s8.bf16 %v112
    %v135 = vunpack.c.h.s8.bf16 %v111
    %v136 = vunpack.c.h.s8.bf16 %v112
    %v137 = vunpack.c.l.s8.bf16 %v113
    %v138 = vunpack.c.l.s8.bf16 %v114
    %v139 = vunpack.c.h.s8.bf16 %v113
    %v140 = vunpack.c.h.s8.bf16 %v114
    %v141 = vunpack.c.l.s8.bf16 %v115
    %v142 = vunpack.c.l.s8.bf16 %v116
    %v143 = vunpack.c.h.s8.bf16 %v115
    %v144 = vunpack.c.h.s8.bf16 %v116
    %v145 = vunpack.c.l.s8.bf16 %v117
    %v146 = vunpack.c.l.s8.bf16 %v118
    %v147 = vunpack.c.h.s8.bf16 %v117
    %v148 = vunpack.c.h.s8.bf16 %v118
    %v149 = vunpack.c.l.s8.bf16 %v119
    %v150 = vunpack.c.l.s8.bf16 %v120
    %v151 = vunpack.c.h.s8.bf16 %v119
    %v152 = vunpack.c.h.s8.bf16 %v120
    %v153 = vld [vmem:[%s1] sm:$0xf]
    %v154 = vld [vmem:[%s1 + $0x4] sm:$0xf]
    %v155 = vld [vmem:[%s1 + $0x8] sm:$0xf]
    %v156 = vld [vmem:[%s1 + $0xc] sm:$0xf]
    %v157 = vld [vmem:[%s1 + $0x10] sm:$0xf]
    %v158 = vld [vmem:[%s1 + $0x14] sm:$0xf]
    %v159 = vld [vmem:[%s1 + $0x18] sm:$0xf]
    %v160 = vld [vmem:[%s1 + $0x1c] sm:$0xf]
    %v161 = vld [vmem:[%s1 + $0x20] sm:$0xf]
    %v162 = vld [vmem:[%s1 + $0x24] sm:$0xf]
    %v163 = vld [vmem:[%s1 + $0x28] sm:$0xf]
    %v164 = vld [vmem:[%s1 + $0x2c] sm:$0xf]
    %v165 = vld [vmem:[%s1 + $0x30] sm:$0xf]
    %v166 = vld [vmem:[%s1 + $0x34] sm:$0xf]
    %v167 = vld [vmem:[%s1 + $0x38] sm:$0xf]
    %v168 = vld [vmem:[%s1 + $0x3c] sm:$0xf]
    %v169 = vld [vmem:[%s1 + $0x40] sm:$0xf]
    %v170 = vld [vmem:[%s1 + $0x44] sm:$0xf]
    %v171 = vld [vmem:[%s1 + $0x48] sm:$0xf]
    %v172 = vld [vmem:[%s1 + $0x4c] sm:$0xf]
    %v173 = vld [vmem:[%s1 + $0x50] sm:$0xf]
    %v174 = vld [vmem:[%s1 + $0x54] sm:$0xf]
    %v175 = vld [vmem:[%s1 + $0x58] sm:$0xf]
    %v176 = vld [vmem:[%s1 + $0x5c] sm:$0xf]
    %v177 = vld [vmem:[%s1 + $0x60] sm:$0xf]
    %v178 = vld [vmem:[%s1 + $0x64] sm:$0xf]
    %v179 = vld [vmem:[%s1 + $0x68] sm:$0xf]
    %v180 = vld [vmem:[%s1 + $0x6c] sm:$0xf]
    %v181 = vld [vmem:[%s1 + $0x70] sm:$0xf]
    %v182 = vld [vmem:[%s1 + $0x74] sm:$0xf]
    %v183 = vld [vmem:[%s1 + $0x78] sm:$0xf]
    %v184 = vld [vmem:[%s1 + $0x7c] sm:$0xf]
    %v217 = vunpack.c.l.b16 %v153
    %v218 = vunpack.c.l.b16 %v154
    %v219 = vunpack.c.l.b16 %v155
    %v220 = vunpack.c.l.b16 %v156
    %v221 = vunpack.c.l.b16 %v157
    %v222 = vunpack.c.l.b16 %v158
    %v223 = vunpack.c.l.b16 %v159
    %v224 = vunpack.c.l.b16 %v160
    %v225 = vunpack.c.l.b16 %v161
    %v226 = vunpack.c.l.b16 %v162
    %v227 = vunpack.c.l.b16 %v163
    %v228 = vunpack.c.l.b16 %v164
    %v229 = vunpack.c.l.b16 %v165
    %v230 = vunpack.c.l.b16 %v166
    %v231 = vunpack.c.l.b16 %v167
    %v232 = vunpack.c.l.b16 %v168
    %v233 = vunpack.c.l.b16 %v169
    %v234 = vunpack.c.l.b16 %v170
    %v235 = vunpack.c.l.b16 %v171
    %v236 = vunpack.c.l.b16 %v172
    %v237 = vunpack.c.l.b16 %v173
    %v238 = vunpack.c.l.b16 %v174
    %v239 = vunpack.c.l.b16 %v175
    %v240 = vunpack.c.l.b16 %v176
    %v241 = vunpack.c.l.b16 %v177
    %v242 = vunpack.c.l.b16 %v178
    %v243 = vunpack.c.l.b16 %v179
    %v244 = vunpack.c.l.b16 %v180
    %v245 = vunpack.c.l.b16 %v181
    %v246 = vunpack.c.l.b16 %v182
    %v247 = vunpack.c.l.b16 %v183
    %v248 = vunpack.c.l.b16 %v184
    %v249 = vpack.c.b16 %v218, %v217
    %v250 = vpack.c.b16 %v220, %v219
    %v251 = vpack.c.b16 %v222, %v221
    %v252 = vpack.c.b16 %v224, %v223
    %v253 = vpack.c.b16 %v226, %v225
    %v254 = vpack.c.b16 %v228, %v227
    %v255 = vpack.c.b16 %v230, %v229
    %v256 = vpack.c.b16 %v232, %v231
    %v257 = vpack.c.b16 %v234, %v233
    %v258 = vpack.c.b16 %v236, %v235
    %v259 = vpack.c.b16 %v238, %v237
    %v260 = vpack.c.b16 %v240, %v239
    %v261 = vpack.c.b16 %v242, %v241
    %v262 = vpack.c.b16 %v244, %v243
    %v263 = vpack.c.b16 %v246, %v245
    %v264 = vpack.c.b16 %v248, %v247
    %281 = vmatprep.subr.bf16.mxu0 0
    %282 = vmatpush1.bf16.msra.mxu0 %v256
    %283 = vmatprep.subr.bf16.mxu0 0
    %284 = vmatpush1.bf16.msra.mxu0 %v255
    %285 = vmatprep.subr.bf16.mxu0 0
    %286 = vmatpush1.bf16.msra.mxu0 %v254
    %287 = vmatprep.subr.bf16.mxu0 0
    %288 = vmatpush1.bf16.msra.mxu0 %v253
    %289 = vmatprep.subr.bf16.mxu0 0
    %290 = vmatpush1.bf16.msra.mxu0 %v252
    %291 = vmatprep.subr.bf16.mxu0 0
    %292 = vmatpush1.bf16.msra.mxu0 %v251
    %293 = vmatprep.subr.bf16.mxu0 0
    %294 = vmatpush1.bf16.msra.mxu0 %v250
    %295 = vmatprep.subr.bf16.mxu0 0
    %296 = vmatpush1.bf16.msra.mxu0 %v249
    %297 = vmatprep.subr.bf16.mxu0 0
    %298 = vmatpush2.bf16.msra.mxu0 %v264
    %299 = vmatprep.subr.bf16.mxu0 0
    %300 = vmatpush2.bf16.msra.mxu0 %v263
    %301 = vmatprep.subr.bf16.mxu0 0
    %302 = vmatpush2.bf16.msra.mxu0 %v262
    %303 = vmatprep.subr.bf16.mxu0 0
    %304 = vmatpush2.bf16.msra.mxu0 %v261
    %305 = vmatprep.subr.bf16.mxu0 0
    %306 = vmatpush2.bf16.msra.mxu0 %v260
    %307 = vmatprep.subr.bf16.mxu0 0
    %308 = vmatpush2.bf16.msra.mxu0 %v259
    %309 = vmatprep.subr.bf16.mxu0 0
    %310 = vmatpush2.bf16.msra.mxu0 %v258
    %311 = vmatprep.subr.bf16.mxu0 0
    %312 = vmatpush2.bf16.msra.mxu0 %v257
    %313 = vmatprep.mubr.bf16.mxu0 %v122
    %314 = vmatmul.mubr.bf16.gmra.mxu0 %v121
    %v315 = vpop.f32.mrf.mxu0
    %v316 = vadd.f32 0.0, %v315
    %v317 = vpop.f32.mrf.mxu0
    %v318 = vpop.f32.mrf.mxu0
    %v319 = vadd.f32 0.0, %v318
    %v320 = vpop.f32.mrf.mxu0
    %321 = vmatprep.mubr.bf16.mxu0 %v124
    %322 = vmatmul.mubr.bf16.gmra.mxu0 %v123
    %v323 = vpop.f32.mrf.mxu0
    %v324 = vadd.f32 0.0, %v323
    %v325 = vpop.f32.mrf.mxu0
    %v326 = vpop.f32.mrf.mxu0
    %v327 = vadd.f32 0.0, %v326
    %v328 = vpop.f32.mrf.mxu0
    %329 = vmatprep.mubr.bf16.mxu0 %v126
    %330 = vmatmul.mubr.bf16.gmra.mxu0 %v125
    %v331 = vpop.f32.mrf.mxu0
    %v332 = vadd.f32 0.0, %v331
    %v333 = vpop.f32.mrf.mxu0
    %v334 = vpop.f32.mrf.mxu0
    %v335 = vadd.f32 0.0, %v334
    %v336 = vpop.f32.mrf.mxu0
    %337 = vmatprep.mubr.bf16.mxu0 %v128
    %338 = vmatmul.mubr.bf16.gmra.mxu0 %v127
    %v339 = vpop.f32.mrf.mxu0
    %v340 = vadd.f32 0.0, %v339
    %v341 = vpop.f32.mrf.mxu0
    %v342 = vpop.f32.mrf.mxu0
    %v343 = vadd.f32 0.0, %v342
    %v344 = vpop.f32.mrf.mxu0
    %345 = vmatprep.mubr.bf16.mxu0 %v130
    %346 = vmatmul.mubr.bf16.gmra.mxu0 %v129
    %v347 = vpop.f32.mrf.mxu0
    %v348 = vadd.f32 0.0, %v347
    %v349 = vpop.f32.mrf.mxu0
    %v350 = vpop.f32.mrf.mxu0
    %v351 = vadd.f32 0.0, %v350
    %v352 = vpop.f32.mrf.mxu0
    %353 = vmatprep.mubr.bf16.mxu0 %v132
    %354 = vmatmul.mubr.bf16.gmra.mxu0 %v131
    %v355 = vpop.f32.mrf.mxu0
    %v356 = vadd.f32 0.0, %v355
    %v357 = vpop.f32.mrf.mxu0
    %v358 = vpop.f32.mrf.mxu0
    %v359 = vadd.f32 0.0, %v358
    %v360 = vpop.f32.mrf.mxu0
    %361 = vmatprep.mubr.bf16.mxu0 %v134
    %362 = vmatmul.mubr.bf16.gmra.mxu0 %v133
    %v363 = vpop.f32.mrf.mxu0
    %v364 = vadd.f32 0.0, %v363
    %v365 = vpop.f32.mrf.mxu0
    %v366 = vpop.f32.mrf.mxu0
    %v367 = vadd.f32 0.0, %v366
    %v368 = vpop.f32.mrf.mxu0
    %369 = vmatprep.mubr.bf16.mxu0 %v136
    %370 = vmatmul.mubr.bf16.gmra.mxu0 %v135
    %v371 = vpop.f32.mrf.mxu0
    %v372 = vadd.f32 0.0, %v371
    %v373 = vpop.f32.mrf.mxu0
    %v374 = vpop.f32.mrf.mxu0
    %v375 = vadd.f32 0.0, %v374
    %v376 = vpop.f32.mrf.mxu0
    %377 = vmatprep.mubr.bf16.mxu0 %v138
    %378 = vmatmul.mubr.bf16.gmra.mxu0 %v137
    %v379 = vpop.f32.mrf.mxu0
    %v380 = vadd.f32 0.0, %v379
    %v381 = vpop.f32.mrf.mxu0
    %v382 = vpop.f32.mrf.mxu0
    %v383 = vadd.f32 0.0, %v382
    %v384 = vpop.f32.mrf.mxu0
    %385 = vmatprep.mubr.bf16.mxu0 %v140
    %386 = vmatmul.mubr.bf16.gmra.mxu0 %v139
    %v387 = vpop.f32.mrf.mxu0
    %v388 = vadd.f32 0.0, %v387
    %v389 = vpop.f32.mrf.mxu0
    %v390 = vpop.f32.mrf.mxu0
    %v391 = vadd.f32 0.0, %v390
    %v392 = vpop.f32.mrf.mxu0
    %393 = vmatprep.mubr.bf16.mxu0 %v142
    %394 = vmatmul.mubr.bf16.gmra.mxu0 %v141
    %v395 = vpop.f32.mrf.mxu0
    %v396 = vadd.f32 0.0, %v395
    %v397 = vpop.f32.mrf.mxu0
    %v398 = vpop.f32.mrf.mxu0
    %v399 = vadd.f32 0.0, %v398
    %v400 = vpop.f32.mrf.mxu0
    %401 = vmatprep.mubr.bf16.mxu0 %v144
    %402 = vmatmul.mubr.bf16.gmra.mxu0 %v143
    %v403 = vpop.f32.mrf.mxu0
    %v404 = vadd.f32 0.0, %v403
    %v405 = vpop.f32.mrf.mxu0
    %v406 = vpop.f32.mrf.mxu0
    %v407 = vadd.f32 0.0, %v406
    %v408 = vpop.f32.mrf.mxu0
    %409 = vmatprep.mubr.bf16.mxu0 %v146
    %410 = vmatmul.mubr.bf16.gmra.mxu0 %v145
    %v411 = vpop.f32.mrf.mxu0
    %v412 = vadd.f32 0.0, %v411
    %v413 = vpop.f32.mrf.mxu0
    %v414 = vpop.f32.mrf.mxu0
    %v415 = vadd.f32 0.0, %v414
    %v416 = vpop.f32.mrf.mxu0
    %417 = vmatprep.mubr.bf16.mxu0 %v148
    %418 = vmatmul.mubr.bf16.gmra.mxu0 %v147
    %v419 = vpop.f32.mrf.mxu0
    %v420 = vadd.f32 0.0, %v419
    %v421 = vpop.f32.mrf.mxu0
    %v422 = vpop.f32.mrf.mxu0
    %v423 = vadd.f32 0.0, %v422
    %v424 = vpop.f32.mrf.mxu0
    %425 = vmatprep.mubr.bf16.mxu0 %v150
    %426 = vmatmul.mubr.bf16.gmra.mxu0 %v149
    %v427 = vpop.f32.mrf.mxu0
    %v428 = vadd.f32 0.0, %v427
    %v429 = vpop.f32.mrf.mxu0
    %v430 = vpop.f32.mrf.mxu0
    %v431 = vadd.f32 0.0, %v430
    %v432 = vpop.f32.mrf.mxu0
    %433 = vmatprep.mubr.bf16.mxu0 %v152
    %434 = vmatmul.mubr.bf16.gmra.mxu0 %v151
    %v435 = vpop.f32.mrf.mxu0
    %v436 = vadd.f32 0.0, %v435
    %v437 = vpop.f32.mrf.mxu0
    %v438 = vpop.f32.mrf.mxu0
    %v439 = vadd.f32 0.0, %v438
    %v440 = vpop.f32.mrf.mxu0
    %441 = vdwg.mxu0
    %v442 = vadd.f32 %v73, %v316
    %v443 = vadd.f32 %v74, %v319
    %v444 = vadd.f32 %v75, %v324
    %v445 = vadd.f32 %v76, %v327
    %v446 = vadd.f32 %v77, %v332
    %v447 = vadd.f32 %v78, %v335
    %v448 = vadd.f32 %v79, %v340
    %v449 = vadd.f32 %v80, %v343
    %v450 = vadd.f32 %v81, %v348
    %v451 = vadd.f32 %v82, %v351
    %v452 = vadd.f32 %v83, %v356
    %v453 = vadd.f32 %v84, %v359
    %v454 = vadd.f32 %v85, %v364
    %v455 = vadd.f32 %v86, %v367
    %v456 = vadd.f32 %v87, %v372
    %v457 = vadd.f32 %v88, %v375
    %v458 = vadd.f32 %v89, %v380
    %v459 = vadd.f32 %v90, %v383
    %v460 = vadd.f32 %v91, %v388
    %v461 = vadd.f32 %v92, %v391
    %v462 = vadd.f32 %v93, %v396
    %v463 = vadd.f32 %v94, %v399
    %v464 = vadd.f32 %v95, %v404
    %v465 = vadd.f32 %v96, %v407
    %v466 = vadd.f32 %v97, %v412
    %v467 = vadd.f32 %v98, %v415
    %v468 = vadd.f32 %v99, %v420
    %v469 = vadd.f32 %v100, %v423
    %v470 = vadd.f32 %v101, %v428
    %v471 = vadd.f32 %v102, %v431
    %v472 = vadd.f32 %v103, %v436
    %v473 = vadd.f32 %v104, %v439
    %vm474 = vcmask 31744
    %475 = vst.msk [vmem:[#allocation2] sm:$0xff] %vm474, %v442
    %476 = vst.msk [vmem:[#allocation2 + $0x8] sm:$0xff] %vm474, %v443
    %477 = vst.msk [vmem:[#allocation2 + $0x10] sm:$0xff] %vm474, %v444
    %478 = vst.msk [vmem:[#allocation2 + $0x18] sm:$0xff] %vm474, %v445
    %479 = vst.msk [vmem:[#allocation2 + $0x20] sm:$0xff] %vm474, %v446
    %480 = vst.msk [vmem:[#allocation2 + $0x28] sm:$0xff] %vm474, %v447
    %481 = vst.msk [vmem:[#allocation2 + $0x30] sm:$0xff] %vm474, %v448
    %482 = vst.msk [vmem:[#allocation2 + $0x38] sm:$0xff] %vm474, %v449
    %483 = vst.msk [vmem:[#allocation2 + $0x40] sm:$0xff] %vm474, %v450
    %484 = vst.msk [vmem:[#allocation2 + $0x48] sm:$0xff] %vm474, %v451
    %485 = vst.msk [vmem:[#allocation2 + $0x50] sm:$0xff] %vm474, %v452
    %486 = vst.msk [vmem:[#allocation2 + $0x58] sm:$0xff] %vm474, %v453
    %487 = vst.msk [vmem:[#allocation2 + $0x60] sm:$0xff] %vm474, %v454
    %488 = vst.msk [vmem:[#allocation2 + $0x68] sm:$0xff] %vm474, %v455
    %489 = vst.msk [vmem:[#allocation2 + $0x70] sm:$0xff] %vm474, %v456
    %490 = vst.msk [vmem:[#allocation2 + $0x78] sm:$0xff] %vm474, %v457
    %491 = vst.msk [vmem:[#allocation2 + $0x80] sm:$0xff] %vm474, %v458
    %492 = vst.msk [vmem:[#allocation2 + $0x88] sm:$0xff] %vm474, %v459
    %493 = vst.msk [vmem:[#allocation2 + $0x90] sm:$0xff] %vm474, %v460
    %494 = vst.msk [vmem:[#allocation2 + $0x98] sm:$0xff] %vm474, %v461
    %495 = vst.msk [vmem:[#allocation2 + $0xa0] sm:$0xff] %vm474, %v462
    %496 = vst.msk [vmem:[#allocation2 + $0xa8] sm:$0xff] %vm474, %v463
    %497 = vst.msk [vmem:[#allocation2 + $0xb0] sm:$0xff] %vm474, %v464
    %498 = vst.msk [vmem:[#allocation2 + $0xb8] sm:$0xff] %vm474, %v465
    %499 = vst.msk [vmem:[#allocation2 + $0xc0] sm:$0xff] %vm474, %v466
    %500 = vst.msk [vmem:[#allocation2 + $0xc8] sm:$0xff] %vm474, %v467
    %501 = vst.msk [vmem:[#allocation2 + $0xd0] sm:$0xff] %vm474, %v468
    %502 = vst.msk [vmem:[#allocation2 + $0xd8] sm:$0xff] %vm474, %v469
    %503 = vst.msk [vmem:[#allocation2 + $0xe0] sm:$0xff] %vm474, %v470
    %504 = vst.msk [vmem:[#allocation2 + $0xe8] sm:$0xff] %vm474, %v471
    %505 = vst.msk [vmem:[#allocation2 + $0xf0] sm:$0xff] %vm474, %v472
    %506 = vst.msk [vmem:[#allocation2 + $0xf8] sm:$0xff] %vm474, %v473
    // Predicated region
    $region30: #{tpu_custom_call.1} parent=1 // pred_check
      %p507 = pneg %p36
    $region31: #{tpu_custom_call.1} parent=1 // pred_check_branch
      %509 = sbr.rel (%p507) target = $region33
    $region32: #{tpu_custom_call.1} parent=1 // pred_region
      %v510 = vld [vmem:[%s3] sm:$0x3]
      %v511 = vld [vmem:[#allocation2] sm:$0xff]
      %v512 = vld [vmem:[#allocation2 + $0x8] sm:$0xff]
      %v513 = vld [vmem:[#allocation2 + $0x10] sm:$0xff]
      %v514 = vld [vmem:[#allocation2 + $0x18] sm:$0xff]
      %v515 = vld [vmem:[#allocation2 + $0x20] sm:$0xff]
      %v516 = vld [vmem:[#allocation2 + $0x28] sm:$0xff]
      %v517 = vld [vmem:[#allocation2 + $0x30] sm:$0xff]
      %v518 = vld [vmem:[#allocation2 + $0x38] sm:$0xff]
      %v519 = vld [vmem:[#allocation2 + $0x40] sm:$0xff]
      %v520 = vld [vmem:[#allocation2 + $0x48] sm:$0xff]
      %v521 = vld [vmem:[#allocation2 + $0x50] sm:$0xff]
      %v522 = vld [vmem:[#allocation2 + $0x58] sm:$0xff]
      %v523 = vld [vmem:[#allocation2 + $0x60] sm:$0xff]
      %v524 = vld [vmem:[#allocation2 + $0x68] sm:$0xff]
      %v525 = vld [vmem:[#allocation2 + $0x70] sm:$0xff]
      %v526 = vld [vmem:[#allocation2 + $0x78] sm:$0xff]
      %v527 = vld [vmem:[#allocation2 + $0x80] sm:$0xff]
      %v528 = vld [vmem:[#allocation2 + $0x88] sm:$0xff]
      %v529 = vld [vmem:[#allocation2 + $0x90] sm:$0xff]
      %v530 = vld [vmem:[#allocation2 + $0x98] sm:$0xff]
      %v531 = vld [vmem:[#allocation2 + $0xa0] sm:$0xff]
      %v532 = vld [vmem:[#allocation2 + $0xa8] sm:$0xff]
      %v533 = vld [vmem:[#allocation2 + $0xb0] sm:$0xff]
      %v534 = vld [vmem:[#allocation2 + $0xb8] sm:$0xff]
      %v535 = vld [vmem:[#allocation2 + $0xc0] sm:$0xff]
      %v536 = vld [vmem:[#allocation2 + $0xc8] sm:$0xff]
      %v537 = vld [vmem:[#allocation2 + $0xd0] sm:$0xff]
      %v538 = vld [vmem:[#allocation2 + $0xd8] sm:$0xff]
      %v539 = vld [vmem:[#allocation2 + $0xe0] sm:$0xff]
      %v540 = vld [vmem:[#allocation2 + $0xe8] sm:$0xff]
      %v541 = vld [vmem:[#allocation2 + $0xf0] sm:$0xff]
      %v542 = vld [vmem:[#allocation2 + $0xf8] sm:$0xff]
      %v543 = vld [vmem:[%s2] sm:$0xf]
      %v544 = vlaneseq
      %v545 = vshrl.u32 %v544, 7
      %v546 = vsub.s32 0, %v545
      %v547 = vrot.slane %v510, %v546
      %v549 = vsel %vm474, %v511, 0
      %v552 = vsel %vm474, %v512, 0
      %v555 = vsel %vm474, %v513, 0
      %v558 = vsel %vm474, %v514, 0
      %v561 = vsel %vm474, %v515, 0
      %v564 = vsel %vm474, %v516, 0
      %v567 = vsel %vm474, %v517, 0
      %v570 = vsel %vm474, %v518, 0
      %v573 = vsel %vm474, %v519, 0
      %v576 = vsel %vm474, %v520, 0
      %v579 = vsel %vm474, %v521, 0
      %v582 = vsel %vm474, %v522, 0
      %v585 = vsel %vm474, %v523, 0
      %v588 = vsel %vm474, %v524, 0
      %v591 = vsel %vm474, %v525, 0
      %v594 = vsel %vm474, %v526, 0
      %v597 = vsel %vm474, %v527, 0
      %v600 = vsel %vm474, %v528, 0
      %v603 = vsel %vm474, %v529, 0
      %v606 = vsel %vm474, %v530, 0
      %v609 = vsel %vm474, %v531, 0
      %v612 = vsel %vm474, %v532, 0
      %v615 = vsel %vm474, %v533, 0
      %v618 = vsel %vm474, %v534, 0
      %v621 = vsel %vm474, %v535, 0
      %v624 = vsel %vm474, %v536, 0
      %v627 = vsel %vm474, %v537, 0
      %v630 = vsel %vm474, %v538, 0
      %v633 = vsel %vm474, %v539, 0
      %v636 = vsel %vm474, %v540, 0
      %v639 = vsel %vm474, %v541, 0
      %v642 = vsel %vm474, %v542, 0
      %vm644 = vcmask 1043456
      %v646 = vsel %vm644, %v543, 0
      %648 = vmatprep.subr.mxu0 0.0
      %649 = vmatpush1.msra.mxu0 0.0
      %650 = vmatprep.subr.mxu0 0.0
      %651 = vmatpush1.msra.mxu0 0.0
      %652 = vmatprep.subr.mxu0 0.0
      %653 = vmatpush1.msra.mxu0 0.0
      %654 = vmatprep.subr.mxu0 0.0
      %655 = vmatpush1.msra.mxu0 0.0
      %656 = vmatprep.subr.mxu0 0.0
      %657 = vmatpush1.msra.mxu0 0.0
      %658 = vmatprep.subr.mxu0 0.0
      %659 = vmatpush1.msra.mxu0 0.0
      %660 = vmatprep.subr.mxu0 0.0
      %661 = vmatpush1.msra.mxu0 0.0
      %662 = vmatprep.subr.mxu0 0.0
      %663 = vmatpush1.msra.mxu0 0.0
      %664 = vmatprep.subr.mxu0 0.0
      %665 = vmatpush1.msra.mxu0 0.0
      %666 = vmatprep.subr.mxu0 0.0
      %667 = vmatpush1.msra.mxu0 0.0
      %668 = vmatprep.subr.mxu0 0.0
      %669 = vmatpush1.msra.mxu0 0.0
      %670 = vmatprep.subr.mxu0 0.0
      %671 = vmatpush1.msra.mxu0 0.0
      %672 = vmatprep.subr.mxu0 0.0
      %673 = vmatpush1.msra.mxu0 0.0
      %674 = vmatprep.subr.mxu0 0.0
      %675 = vmatpush1.msra.mxu0 0.0
      %676 = vmatprep.subr.mxu0 0.0
      %677 = vmatpush1.msra.mxu0 0.0
      %678 = vmatprep.subr.mxu0 0.0
      %679 = vmatpush1.msra.mxu0 %v646
      %680 = vmatprep.subr.mxu0 0.0
      %681 = vmatpush2.msra.mxu0 0.0
      %682 = vmatprep.subr.mxu0 0.0
      %683 = vmatpush2.msra.mxu0 0.0
      %684 = vmatprep.subr.mxu0 0.0
      %685 = vmatpush2.msra.mxu0 0.0
      %686 = vmatprep.subr.mxu0 0.0
      %687 = vmatpush2.msra.mxu0 0.0
      %688 = vmatprep.subr.mxu0 0.0
      %689 = vmatpush2.msra.mxu0 0.0
      %690 = vmatprep.subr.mxu0 0.0
      %691 = vmatpush2.msra.mxu0 0.0
      %692 = vmatprep.subr.mxu0 0.0
      %693 = vmatpush2.msra.mxu0 0.0
      %694 = vmatprep.subr.mxu0 0.0
      %695 = vmatpush2.msra.mxu0 0.0
      %696 = vmatprep.subr.mxu0 0.0
      %697 = vmatpush2.msra.mxu0 0.0
      %698 = vmatprep.subr.mxu0 0.0
      %699 = vmatpush2.msra.mxu0 0.0
      %700 = vmatprep.subr.mxu0 0.0
      %701 = vmatpush2.msra.mxu0 0.0
      %702 = vmatprep.subr.mxu0 0.0
      %703 = vmatpush2.msra.mxu0 0.0
      %704 = vmatprep.subr.mxu0 0.0
      %705 = vmatpush2.msra.mxu0 0.0
      %706 = vmatprep.subr.mxu0 0.0
      %707 = vmatpush2.msra.mxu0 0.0
      %708 = vmatprep.subr.mxu0 0.0
      %709 = vmatpush2.msra.mxu0 0.0
      %710 = vmatprep.subr.mxu0 0.0
      %711 = vmatpush2.msra.mxu0 0.0
      %712 = vmatprep.mubr.f32.mxu0 0.0
      %713 = vmatmul.mubr.f32.gmra.mxu0 %v549
      %v714 = vpop.f32.mrf.mxu0
      %v715 = vadd.f32 %v547, %v714
      %v716 = vpop.f32.mrf.mxu0
      %717 = vmatprep.mubr.f32.mxu0 0.0
      %718 = vmatmul.mubr.f32.gmra.mxu0 %v552
      %v719 = vpop.f32.mrf.mxu0
      %v720 = vadd.f32 %v547, %v719
      %v721 = vpop.f32.mrf.mxu0
      %722 = vmatprep.mubr.f32.mxu0 0.0
      %723 = vmatmul.mubr.f32.gmra.mxu0 %v555
      %v724 = vpop.f32.mrf.mxu0
      %v725 = vadd.f32 %v547, %v724
      %v726 = vpop.f32.mrf.mxu0
      %727 = vmatprep.mubr.f32.mxu0 0.0
      %728 = vmatmul.mubr.f32.gmra.mxu0 %v558
      %v729 = vpop.f32.mrf.mxu0
      %v730 = vadd.f32 %v547, %v729
      %v731 = vpop.f32.mrf.mxu0
      %732 = vmatprep.mubr.f32.mxu0 0.0
      %733 = vmatmul.mubr.f32.gmra.mxu0 %v561
      %v734 = vpop.f32.mrf.mxu0
      %v735 = vadd.f32 %v547, %v734
      %v736 = vpop.f32.mrf.mxu0
      %737 = vmatprep.mubr.f32.mxu0 0.0
      %738 = vmatmul.mubr.f32.gmra.mxu0 %v564
      %v739 = vpop.f32.mrf.mxu0
      %v740 = vadd.f32 %v547, %v739
      %v741 = vpop.f32.mrf.mxu0
      %742 = vmatprep.mubr.f32.mxu0 0.0
      %743 = vmatmul.mubr.f32.gmra.mxu0 %v567
      %v744 = vpop.f32.mrf.mxu0
      %v745 = vadd.f32 %v547, %v744
      %v746 = vpop.f32.mrf.mxu0
      %747 = vmatprep.mubr.f32.mxu0 0.0
      %748 = vmatmul.mubr.f32.gmra.mxu0 %v570
      %v749 = vpop.f32.mrf.mxu0
      %v750 = vadd.f32 %v547, %v749
      %v751 = vpop.f32.mrf.mxu0
      %752 = vmatprep.mubr.f32.mxu0 0.0
      %753 = vmatmul.mubr.f32.gmra.mxu0 %v573
      %v754 = vpop.f32.mrf.mxu0
      %v755 = vadd.f32 %v547, %v754
      %v756 = vpop.f32.mrf.mxu0
      %757 = vmatprep.mubr.f32.mxu0 0.0
      %758 = vmatmul.mubr.f32.gmra.mxu0 %v576
      %v759 = vpop.f32.mrf.mxu0
      %v760 = vadd.f32 %v547, %v759
      %v761 = vpop.f32.mrf.mxu0
      %762 = vmatprep.mubr.f32.mxu0 0.0
      %763 = vmatmul.mubr.f32.gmra.mxu0 %v579
      %v764 = vpop.f32.mrf.mxu0
      %v765 = vadd.f32 %v547, %v764
      %v766 = vpop.f32.mrf.mxu0
      %767 = vmatprep.mubr.f32.mxu0 0.0
      %768 = vmatmul.mubr.f32.gmra.mxu0 %v582
      %v769 = vpop.f32.mrf.mxu0
      %v770 = vadd.f32 %v547, %v769
      %v771 = vpop.f32.mrf.mxu0
      %772 = vmatprep.mubr.f32.mxu0 0.0
      %773 = vmatmul.mubr.f32.gmra.mxu0 %v585
      %v774 = vpop.f32.mrf.mxu0
      %v775 = vadd.f32 %v547, %v774
      %v776 = vpop.f32.mrf.mxu0
      %777 = vmatprep.mubr.f32.mxu0 0.0
      %778 = vmatmul.mubr.f32.gmra.mxu0 %v588
      %v779 = vpop.f32.mrf.mxu0
      %v780 = vadd.f32 %v547, %v779
      %v781 = vpop.f32.mrf.mxu0
      %782 = vmatprep.mubr.f32.mxu0 0.0
      %783 = vmatmul.mubr.f32.gmra.mxu0 %v591
      %v784 = vpop.f32.mrf.mxu0
      %v785 = vadd.f32 %v547, %v784
      %v786 = vpop.f32.mrf.mxu0
      %787 = vmatprep.mubr.f32.mxu0 0.0
      %788 = vmatmul.mubr.f32.gmra.mxu0 %v594
      %v789 = vpop.f32.mrf.mxu0
      %v790 = vadd.f32 %v547, %v789
      %v791 = vpop.f32.mrf.mxu0
      %792 = vmatprep.mubr.f32.mxu0 0.0
      %793 = vmatmul.mubr.f32.gmra.mxu0 %v597
      %v794 = vpop.f32.mrf.mxu0
      %v795 = vadd.f32 %v547, %v794
      %v796 = vpop.f32.mrf.mxu0
      %797 = vmatprep.mubr.f32.mxu0 0.0
      %798 = vmatmul.mubr.f32.gmra.mxu0 %v600
      %v799 = vpop.f32.mrf.mxu0
      %v800 = vadd.f32 %v547, %v799
      %v801 = vpop.f32.mrf.mxu0
      %802 = vmatprep.mubr.f32.mxu0 0.0
      %803 = vmatmul.mubr.f32.gmra.mxu0 %v603
      %v804 = vpop.f32.mrf.mxu0
      %v805 = vadd.f32 %v547, %v804
      %v806 = vpop.f32.mrf.mxu0
      %807 = vmatprep.mubr.f32.mxu0 0.0
      %808 = vmatmul.mubr.f32.gmra.mxu0 %v606
      %v809 = vpop.f32.mrf.mxu0
      %v810 = vadd.f32 %v547, %v809
      %v811 = vpop.f32.mrf.mxu0
      %812 = vmatprep.mubr.f32.mxu0 0.0
      %813 = vmatmul.mubr.f32.gmra.mxu0 %v609
      %v814 = vpop.f32.mrf.mxu0
      %v815 = vadd.f32 %v547, %v814
      %v816 = vpop.f32.mrf.mxu0
      %817 = vmatprep.mubr.f32.mxu0 0.0
      %818 = vmatmul.mubr.f32.gmra.mxu0 %v612
      %v819 = vpop.f32.mrf.mxu0
      %v820 = vadd.f32 %v547, %v819
      %v821 = vpop.f32.mrf.mxu0
      %822 = vmatprep.mubr.f32.mxu0 0.0
      %823 = vmatmul.mubr.f32.gmra.mxu0 %v615
      %v824 = vpop.f32.mrf.mxu0
      %v825 = vadd.f32 %v547, %v824
      %v826 = vpop.f32.mrf.mxu0
      %827 = vmatprep.mubr.f32.mxu0 0.0
      %828 = vmatmul.mubr.f32.gmra.mxu0 %v618
      %v829 = vpop.f32.mrf.mxu0
      %v830 = vadd.f32 %v547, %v829
      %v831 = vpop.f32.mrf.mxu0
      %832 = vmatprep.mubr.f32.mxu0 0.0
      %833 = vmatmul.mubr.f32.gmra.mxu0 %v621
      %v834 = vpop.f32.mrf.mxu0
      %v835 = vadd.f32 %v547, %v834
      %v836 = vpop.f32.mrf.mxu0
      %837 = vmatprep.mubr.f32.mxu0 0.0
      %838 = vmatmul.mubr.f32.gmra.mxu0 %v624
      %v839 = vpop.f32.mrf.mxu0
      %v840 = vadd.f32 %v547, %v839
      %v841 = vpop.f32.mrf.mxu0
      %842 = vmatprep.mubr.f32.mxu0 0.0
      %843 = vmatmul.mubr.f32.gmra.mxu0 %v627
      %v844 = vpop.f32.mrf.mxu0
      %v845 = vadd.f32 %v547, %v844
      %v846 = vpop.f32.mrf.mxu0
      %847 = vmatprep.mubr.f32.mxu0 0.0
      %848 = vmatmul.mubr.f32.gmra.mxu0 %v630
      %v849 = vpop.f32.mrf.mxu0
      %v850 = vadd.f32 %v547, %v849
      %v851 = vpop.f32.mrf.mxu0
      %852 = vmatprep.mubr.f32.mxu0 0.0
      %853 = vmatmul.mubr.f32.gmra.mxu0 %v633
      %v854 = vpop.f32.mrf.mxu0
      %v855 = vadd.f32 %v547, %v854
      %v856 = vpop.f32.mrf.mxu0
      %857 = vmatprep.mubr.f32.mxu0 0.0
      %858 = vmatmul.mubr.f32.gmra.mxu0 %v636
      %v859 = vpop.f32.mrf.mxu0
      %v860 = vadd.f32 %v547, %v859
      %v861 = vpop.f32.mrf.mxu0
      %862 = vmatprep.mubr.f32.mxu0 0.0
      %863 = vmatmul.mubr.f32.gmra.mxu0 %v639
      %v864 = vpop.f32.mrf.mxu0
      %v865 = vadd.f32 %v547, %v864
      %v866 = vpop.f32.mrf.mxu0
      %867 = vmatprep.mubr.f32.mxu0 0.0
      %868 = vmatmul.mubr.f32.gmra.mxu0 %v642
      %v869 = vpop.f32.mrf.mxu0
      %v870 = vadd.f32 %v547, %v869
      %v871 = vpop.f32.mrf.mxu0
      %872 = vdwg.mxu0
      %v873 = vmax.f32 %v715, 0.0
      %v874 = vmax.f32 %v720, 0.0
      %v875 = vmax.f32 %v725, 0.0
      %v876 = vmax.f32 %v730, 0.0
      %v877 = vmax.f32 %v735, 0.0
      %v878 = vmax.f32 %v740, 0.0
      %v879 = vmax.f32 %v745, 0.0
      %v880 = vmax.f32 %v750, 0.0
      %v881 = vmax.f32 %v755, 0.0
      %v882 = vmax.f32 %v760, 0.0
      %v883 = vmax.f32 %v765, 0.0
      %v884 = vmax.f32 %v770, 0.0
      %v885 = vmax.f32 %v775, 0.0
      %v886 = vmax.f32 %v780, 0.0
      %v887 = vmax.f32 %v785, 0.0
      %v888 = vmax.f32 %v790, 0.0
      %v889 = vmax.f32 %v795, 0.0
      %v890 = vmax.f32 %v800, 0.0
      %v891 = vmax.f32 %v805, 0.0
      %v892 = vmax.f32 %v810, 0.0
      %v893 = vmax.f32 %v815, 0.0
      %v894 = vmax.f32 %v820, 0.0
      %v895 = vmax.f32 %v825, 0.0
      %v896 = vmax.f32 %v830, 0.0
      %v897 = vmax.f32 %v835, 0.0
      %v898 = vmax.f32 %v840, 0.0
      %v899 = vmax.f32 %v845, 0.0
      %v900 = vmax.f32 %v850, 0.0
      %v901 = vmax.f32 %v855, 0.0
      %v902 = vmax.f32 %v860, 0.0
      %v903 = vmax.f32 %v865, 0.0
      %v904 = vmax.f32 %v870, 0.0
      %v905 = vld [vmem:[#allocation3] sm:$0xff]
      %v906 = vld [vmem:[#allocation3 + $0x8] sm:$0xff]
      %v907 = vld [vmem:[#allocation3 + $0x10] sm:$0xff]
      %v908 = vld [vmem:[#allocation3 + $0x18] sm:$0xff]
      %v909 = vld [vmem:[#allocation3 + $0x20] sm:$0xff]
      %v910 = vld [vmem:[#allocation3 + $0x28] sm:$0xff]
      %v911 = vld [vmem:[#allocation3 + $0x30] sm:$0xff]
      %v912 = vld [vmem:[#allocation3 + $0x38] sm:$0xff]
      %v913 = vld [vmem:[#allocation3 + $0x40] sm:$0xff]
      %v914 = vld [vmem:[#allocation3 + $0x48] sm:$0xff]
      %v915 = vld [vmem:[#allocation3 + $0x50] sm:$0xff]
      %v916 = vld [vmem:[#allocation3 + $0x58] sm:$0xff]
      %v917 = vld [vmem:[#allocation3 + $0x60] sm:$0xff]
      %v918 = vld [vmem:[#allocation3 + $0x68] sm:$0xff]
      %v919 = vld [vmem:[#allocation3 + $0x70] sm:$0xff]
      %v920 = vld [vmem:[#allocation3 + $0x78] sm:$0xff]
      %v921 = vlaneseq
      %v922 = vshrl.u32 %v921, 7
      %v923 = vsub.s32 1, %v922
      %v924 = vrot.slane %v510, %v923
      %925 = vmatprep.subr.mxu0 0.0
      %926 = vmatpush1.msra.mxu0 %v920
      %927 = vmatprep.subr.mxu0 0.0
      %928 = vmatpush1.msra.mxu0 %v919
      %929 = vmatprep.subr.mxu0 0.0
      %930 = vmatpush1.msra.mxu0 %v918
      %931 = vmatprep.subr.mxu0 0.0
      %932 = vmatpush1.msra.mxu0 %v917
      %933 = vmatprep.subr.mxu0 0.0
      %934 = vmatpush1.msra.mxu0 %v916
      %935 = vmatprep.subr.mxu0 0.0
      %936 = vmatpush1.msra.mxu0 %v915
      %937 = vmatprep.subr.mxu0 0.0
      %938 = vmatpush1.msra.mxu0 %v914
      %939 = vmatprep.subr.mxu0 0.0
      %940 = vmatpush1.msra.mxu0 %v913
      %941 = vmatprep.subr.mxu0 0.0
      %942 = vmatpush1.msra.mxu0 %v912
      %943 = vmatprep.subr.mxu0 0.0
      %944 = vmatpush1.msra.mxu0 %v911
      %945 = vmatprep.subr.mxu0 0.0
      %946 = vmatpush1.msra.mxu0 %v910
      %947 = vmatprep.subr.mxu0 0.0
      %948 = vmatpush1.msra.mxu0 %v909
      %949 = vmatprep.subr.mxu0 0.0
      %950 = vmatpush1.msra.mxu0 %v908
      %951 = vmatprep.subr.mxu0 0.0
      %952 = vmatpush1.msra.mxu0 %v907
      %953 = vmatprep.subr.mxu0 0.0
      %954 = vmatpush1.msra.mxu0 %v906
      %955 = vmatprep.subr.mxu0 0.0
      %956 = vmatpush1.msra.mxu0 %v905
      %957 = vmatprep.subr.mxu0 0.0
      %958 = vmatpush2.msra.mxu0 0.0
      %959 = vmatprep.subr.mxu0 0.0
      %960 = vmatpush2.msra.mxu0 0.0
      %961 = vmatprep.subr.mxu0 0.0
      %962 = vmatpush2.msra.mxu0 0.0
      %963 = vmatprep.subr.mxu0 0.0
      %964 = vmatpush2.msra.mxu0 0.0
      %965 = vmatprep.subr.mxu0 0.0
      %966 = vmatpush2.msra.mxu0 0.0
      %967 = vmatprep.subr.mxu0 0.0
      %968 = vmatpush2.msra.mxu0 0.0
      %969 = vmatprep.subr.mxu0 0.0
      %970 = vmatpush2.msra.mxu0 0.0
      %971 = vmatprep.subr.mxu0 0.0
      %972 = vmatpush2.msra.mxu0 0.0
      %973 = vmatprep.subr.mxu0 0.0
      %974 = vmatpush2.msra.mxu0 0.0
      %975 = vmatprep.subr.mxu0 0.0
      %976 = vmatpush2.msra.mxu0 0.0
      %977 = vmatprep.subr.mxu0 0.0
      %978 = vmatpush2.msra.mxu0 0.0
      %979 = vmatprep.subr.mxu0 0.0
      %980 = vmatpush2.msra.mxu0 0.0
      %981 = vmatprep.subr.mxu0 0.0
      %982 = vmatpush2.msra.mxu0 0.0
      %983 = vmatprep.subr.mxu0 0.0
      %984 = vmatpush2.msra.mxu0 0.0
      %985 = vmatprep.subr.mxu0 0.0
      %986 = vmatpush2.msra.mxu0 0.0
      %987 = vmatprep.subr.mxu0 0.0
      %988 = vmatpush2.msra.mxu0 0.0
      %989 = vmatprep.mubr.f32.mxu0 0.0
      %990 = vmatmul.mubr.f32.gmra.mxu0 %v873
      %v991 = vpop.f32.mrf.mxu0
      %v992 = vadd.f32 %v924, %v991
      %v993 = vpop.f32.mrf.mxu0
      %994 = vmatprep.mubr.f32.mxu0 0.0
      %995 = vmatmul.mubr.f32.gmra.mxu0 %v874
      %v996 = vpop.f32.mrf.mxu0
      %v997 = vadd.f32 %v924, %v996
      %v998 = vpop.f32.mrf.mxu0
      %999 = vmatprep.mubr.f32.mxu0 0.0
      %1000 = vmatmul.mubr.f32.gmra.mxu0 %v875
      %v1001 = vpop.f32.mrf.mxu0
      %v1002 = vadd.f32 %v924, %v1001
      %v1003 = vpop.f32.mrf.mxu0
      %1004 = vmatprep.mubr.f32.mxu0 0.0
      %1005 = vmatmul.mubr.f32.gmra.mxu0 %v876
      %v1006 = vpop.f32.mrf.mxu0
      %v1007 = vadd.f32 %v924, %v1006
      %v1008 = vpop.f32.mrf.mxu0
      %1009 = vmatprep.mubr.f32.mxu0 0.0
      %1010 = vmatmul.mubr.f32.gmra.mxu0 %v877
      %v1011 = vpop.f32.mrf.mxu0
      %v1012 = vadd.f32 %v924, %v1011
      %v1013 = vpop.f32.mrf.mxu0
      %1014 = vmatprep.mubr.f32.mxu0 0.0
      %1015 = vmatmul.mubr.f32.gmra.mxu0 %v878
      %v1016 = vpop.f32.mrf.mxu0
      %v1017 = vadd.f32 %v924, %v1016
      %v1018 = vpop.f32.mrf.mxu0
      %1019 = vmatprep.mubr.f32.mxu0 0.0
      %1020 = vmatmul.mubr.f32.gmra.mxu0 %v879
      %v1021 = vpop.f32.mrf.mxu0
      %v1022 = vadd.f32 %v924, %v1021
      %v1023 = vpop.f32.mrf.mxu0
      %1024 = vmatprep.mubr.f32.mxu0 0.0
      %1025 = vmatmul.mubr.f32.gmra.mxu0 %v880
      %v1026 = vpop.f32.mrf.mxu0
      %v1027 = vadd.f32 %v924, %v1026
      %v1028 = vpop.f32.mrf.mxu0
      %1029 = vmatprep.mubr.f32.mxu0 0.0
      %1030 = vmatmul.mubr.f32.gmra.mxu0 %v881
      %v1031 = vpop.f32.mrf.mxu0
      %v1032 = vadd.f32 %v924, %v1031
      %v1033 = vpop.f32.mrf.mxu0
      %1034 = vmatprep.mubr.f32.mxu0 0.0
      %1035 = vmatmul.mubr.f32.gmra.mxu0 %v882
      %v1036 = vpop.f32.mrf.mxu0
      %v1037 = vadd.f32 %v924, %v1036
      %v1038 = vpop.f32.mrf.mxu0
      %1039 = vmatprep.mubr.f32.mxu0 0.0
      %1040 = vmatmul.mubr.f32.gmra.mxu0 %v883
      %v1041 = vpop.f32.mrf.mxu0
      %v1042 = vadd.f32 %v924, %v1041
      %v1043 = vpop.f32.mrf.mxu0
      %1044 = vmatprep.mubr.f32.mxu0 0.0
      %1045 = vmatmul.mubr.f32.gmra.mxu0 %v884
      %v1046 = vpop.f32.mrf.mxu0
      %v1047 = vadd.f32 %v924, %v1046
      %v1048 = vpop.f32.mrf.mxu0
      %1049 = vmatprep.mubr.f32.mxu0 0.0
      %1050 = vmatmul.mubr.f32.gmra.mxu0 %v885
      %v1051 = vpop.f32.mrf.mxu0
      %v1052 = vadd.f32 %v924, %v1051
      %v1053 = vpop.f32.mrf.mxu0
      %1054 = vmatprep.mubr.f32.mxu0 0.0
      %1055 = vmatmul.mubr.f32.gmra.mxu0 %v886
      %v1056 = vpop.f32.mrf.mxu0
      %v1057 = vadd.f32 %v924, %v1056
      %v1058 = vpop.f32.mrf.mxu0
      %1059 = vmatprep.mubr.f32.mxu0 0.0
      %1060 = vmatmul.mubr.f32.gmra.mxu0 %v887
      %v1061 = vpop.f32.mrf.mxu0
      %v1062 = vadd.f32 %v924, %v1061
      %v1063 = vpop.f32.mrf.mxu0
      %1064 = vmatprep.mubr.f32.mxu0 0.0
      %1065 = vmatmul.mubr.f32.gmra.mxu0 %v888
      %v1066 = vpop.f32.mrf.mxu0
      %v1067 = vadd.f32 %v924, %v1066
      %v1068 = vpop.f32.mrf.mxu0
      %1069 = vmatprep.mubr.f32.mxu0 0.0
      %1070 = vmatmul.mubr.f32.gmra.mxu0 %v889
      %v1071 = vpop.f32.mrf.mxu0
      %v1072 = vadd.f32 %v924, %v1071
      %v1073 = vpop.f32.mrf.mxu0
      %1074 = vmatprep.mubr.f32.mxu0 0.0
      %1075 = vmatmul.mubr.f32.gmra.mxu0 %v890
      %v1076 = vpop.f32.mrf.mxu0
      %v1077 = vadd.f32 %v924, %v1076
      %v1078 = vpop.f32.mrf.mxu0
      %1079 = vmatprep.mubr.f32.mxu0 0.0
      %1080 = vmatmul.mubr.f32.gmra.mxu0 %v891
      %v1081 = vpop.f32.mrf.mxu0
      %v1082 = vadd.f32 %v924, %v1081
      %v1083 = vpop.f32.mrf.mxu0
      %1084 = vmatprep.mubr.f32.mxu0 0.0
      %1085 = vmatmul.mubr.f32.gmra.mxu0 %v892
      %v1086 = vpop.f32.mrf.mxu0
      %v1087 = vadd.f32 %v924, %v1086
      %v1088 = vpop.f32.mrf.mxu0
      %1089 = vmatprep.mubr.f32.mxu0 0.0
      %1090 = vmatmul.mubr.f32.gmra.mxu0 %v893
      %v1091 = vpop.f32.mrf.mxu0
      %v1092 = vadd.f32 %v924, %v1091
      %v1093 = vpop.f32.mrf.mxu0
      %1094 = vmatprep.mubr.f32.mxu0 0.0
      %1095 = vmatmul.mubr.f32.gmra.mxu0 %v894
      %v1096 = vpop.f32.mrf.mxu0
      %v1097 = vadd.f32 %v924, %v1096
      %v1098 = vpop.f32.mrf.mxu0
      %1099 = vmatprep.mubr.f32.mxu0 0.0
      %1100 = vmatmul.mubr.f32.gmra.mxu0 %v895
      %v1101 = vpop.f32.mrf.mxu0
      %v1102 = vadd.f32 %v924, %v1101
      %v1103 = vpop.f32.mrf.mxu0
      %1104 = vmatprep.mubr.f32.mxu0 0.0
      %1105 = vmatmul.mubr.f32.gmra.mxu0 %v896
      %v1106 = vpop.f32.mrf.mxu0
      %v1107 = vadd.f32 %v924, %v1106
      %v1108 = vpop.f32.mrf.mxu0
      %1109 = vmatprep.mubr.f32.mxu0 0.0
      %1110 = vmatmul.mubr.f32.gmra.mxu0 %v897
      %v1111 = vpop.f32.mrf.mxu0
      %v1112 = vadd.f32 %v924, %v1111
      %v1113 = vpop.f32.mrf.mxu0
      %1114 = vmatprep.mubr.f32.mxu0 0.0
      %1115 = vmatmul.mubr.f32.gmra.mxu0 %v898
      %v1116 = vpop.f32.mrf.mxu0
      %v1117 = vadd.f32 %v924, %v1116
      %v1118 = vpop.f32.mrf.mxu0
      %1119 = vmatprep.mubr.f32.mxu0 0.0
      %1120 = vmatmul.mubr.f32.gmra.mxu0 %v899
      %v1121 = vpop.f32.mrf.mxu0
      %v1122 = vadd.f32 %v924, %v1121
      %v1123 = vpop.f32.mrf.mxu0
      %1124 = vmatprep.mubr.f32.mxu0 0.0
      %1125 = vmatmul.mubr.f32.gmra.mxu0 %v900
      %v1126 = vpop.f32.mrf.mxu0
      %v1127 = vadd.f32 %v924, %v1126
      %v1128 = vpop.f32.mrf.mxu0
      %1129 = vmatprep.mubr.f32.mxu0 0.0
      %1130 = vmatmul.mubr.f32.gmra.mxu0 %v901
      %v1131 = vpop.f32.mrf.mxu0
      %v1132 = vadd.f32 %v924, %v1131
      %v1133 = vpop.f32.mrf.mxu0
      %1134 = vmatprep.mubr.f32.mxu0 0.0
      %1135 = vmatmul.mubr.f32.gmra.mxu0 %v902
      %v1136 = vpop.f32.mrf.mxu0
      %v1137 = vadd.f32 %v924, %v1136
      %v1138 = vpop.f32.mrf.mxu0
      %1139 = vmatprep.mubr.f32.mxu0 0.0
      %1140 = vmatmul.mubr.f32.gmra.mxu0 %v903
      %v1141 = vpop.f32.mrf.mxu0
      %v1142 = vadd.f32 %v924, %v1141
      %v1143 = vpop.f32.mrf.mxu0
      %1144 = vmatprep.mubr.f32.mxu0 0.0
      %1145 = vmatmul.mubr.f32.gmra.mxu0 %v904
      %v1146 = vpop.f32.mrf.mxu0
      %v1147 = vadd.f32 %v924, %v1146
      %v1148 = vpop.f32.mrf.mxu0
      %1149 = vdwg.mxu0
      %v1150 = vmax.f32 %v992, 0.0
      %v1151 = vmax.f32 %v997, 0.0
      %v1152 = vmax.f32 %v1002, 0.0
      %v1153 = vmax.f32 %v1007, 0.0
      %v1154 = vmax.f32 %v1012, 0.0
      %v1155 = vmax.f32 %v1017, 0.0
      %v1156 = vmax.f32 %v1022, 0.0
      %v1157 = vmax.f32 %v1027, 0.0
      %v1158 = vmax.f32 %v1032, 0.0
      %v1159 = vmax.f32 %v1037, 0.0
      %v1160 = vmax.f32 %v1042, 0.0
      %v1161 = vmax.f32 %v1047, 0.0
      %v1162 = vmax.f32 %v1052, 0.0
      %v1163 = vmax.f32 %v1057, 0.0
      %v1164 = vmax.f32 %v1062, 0.0
      %v1165 = vmax.f32 %v1067, 0.0
      %v1166 = vmax.f32 %v1072, 0.0
      %v1167 = vmax.f32 %v1077, 0.0
      %v1168 = vmax.f32 %v1082, 0.0
      %v1169 = vmax.f32 %v1087, 0.0
      %v1170 = vmax.f32 %v1092, 0.0
      %v1171 = vmax.f32 %v1097, 0.0
      %v1172 = vmax.f32 %v1102, 0.0
      %v1173 = vmax.f32 %v1107, 0.0
      %v1174 = vmax.f32 %v1112, 0.0
      %v1175 = vmax.f32 %v1117, 0.0
      %v1176 = vmax.f32 %v1122, 0.0
      %v1177 = vmax.f32 %v1127, 0.0
      %v1178 = vmax.f32 %v1132, 0.0
      %v1179 = vmax.f32 %v1137, 0.0
      %v1180 = vmax.f32 %v1142, 0.0
      %v1181 = vmax.f32 %v1147, 0.0
      %1182 = vst [vmem:[#allocation6] sm:$0xff] %v1150
      %1183 = vst [vmem:[#allocation6 + $0x8] sm:$0xff] %v1151
      %1184 = vst [vmem:[#allocation6 + $0x10] sm:$0xff] %v1152
      %1185 = vst [vmem:[#allocation6 + $0x18] sm:$0xff] %v1153
      %1186 = vst [vmem:[#allocation6 + $0x20] sm:$0xff] %v1154
      %1187 = vst [vmem:[#allocation6 + $0x28] sm:$0xff] %v1155
      %1188 = vst [vmem:[#allocation6 + $0x30] sm:$0xff] %v1156
      %1189 = vst [vmem:[#allocation6 + $0x38] sm:$0xff] %v1157
      %1190 = vst [vmem:[#allocation6 + $0x40] sm:$0xff] %v1158
      %1191 = vst [vmem:[#allocation6 + $0x48] sm:$0xff] %v1159
      %1192 = vst [vmem:[#allocation6 + $0x50] sm:$0xff] %v1160
      %1193 = vst [vmem:[#allocation6 + $0x58] sm:$0xff] %v1161
      %1194 = vst [vmem:[#allocation6 + $0x60] sm:$0xff] %v1162
      %1195 = vst [vmem:[#allocation6 + $0x68] sm:$0xff] %v1163
      %1196 = vst [vmem:[#allocation6 + $0x70] sm:$0xff] %v1164
      %1197 = vst [vmem:[#allocation6 + $0x78] sm:$0xff] %v1165
      %1198 = vst [vmem:[#allocation6 + $0x80] sm:$0xff] %v1166
      %1199 = vst [vmem:[#allocation6 + $0x88] sm:$0xff] %v1167
      %1200 = vst [vmem:[#allocation6 + $0x90] sm:$0xff] %v1168
      %1201 = vst [vmem:[#allocation6 + $0x98] sm:$0xff] %v1169
      %1202 = vst [vmem:[#allocation6 + $0xa0] sm:$0xff] %v1170
      %1203 = vst [vmem:[#allocation6 + $0xa8] sm:$0xff] %v1171
      %1204 = vst [vmem:[#allocation6 + $0xb0] sm:$0xff] %v1172
      %1205 = vst [vmem:[#allocation6 + $0xb8] sm:$0xff] %v1173
      %1206 = vst [vmem:[#allocation6 + $0xc0] sm:$0xff] %v1174
      %1207 = vst [vmem:[#allocation6 + $0xc8] sm:$0xff] %v1175
      %1208 = vst [vmem:[#allocation6 + $0xd0] sm:$0xff] %v1176
      %1209 = vst [vmem:[#allocation6 + $0xd8] sm:$0xff] %v1177
      %1210 = vst [vmem:[#allocation6 + $0xe0] sm:$0xff] %v1178
      %1211 = vst [vmem:[#allocation6 + $0xe8] sm:$0xff] %v1179
      %1212 = vst [vmem:[#allocation6 + $0xf0] sm:$0xff] %v1180
      %1213 = vst [vmem:[#allocation6 + $0xf8] sm:$0xff] %v1181
    $region33: #{tpu_custom_call.1} parent=1 // pred_fallthru
      _
    // Predicated region
    $region34: #{tpu_custom_call.1} parent=1 // pred_check
      _
    $region35: #{tpu_custom_call.1} parent=1 // pred_check_branch
      %1215 = sbr.rel (0) target = $region37
    $region36: #{tpu_custom_call.1} parent=1 // pred_region
      %s1217 = ssub.s32 4096, 4096
      %1218 = vsyncadd [#allocation5], %s1217
      %s1219 = sshll.u32 [#allocation6], 4
      %s1220 = int_to_ptr.vmem [resolvable:$true] %s1219
      %1225 = dma.vmem_to_hbm [thread:$0]  %s1220, 4096, %s5, [#allocation5], 128, 128, 8
    $region37: #{tpu_custom_call.1} parent=1 // pred_fallthru
      _
    // Predicated region
    $region38: #{tpu_custom_call.1} parent=1 // pred_check
      _
    $region39: #{tpu_custom_call.1} parent=1 // pred_check_branch
      %1227 = sbr.rel (0) target = $region41
    $region40: #{tpu_custom_call.1} parent=1 // pred_region
      %1228 = dma.done [#allocation5], 4096
    $region41: #{tpu_custom_call.1} parent=1 // pred_fallthru
      _
    %1229 = vsyncpa [#allocation4], 1
    %1230 = vsyncpa [#allocation5], 1

</llo_original>
